<compile_context>
chip_gen: v7x
topology: tpu7x:2x2x1
jax: 0.10.0
libtpu: 0.0.40
codegen_flags: <defaults>
</compile_context>

<pallas_src>
import functools

import jax
import jax.numpy as jnp
from jax.experimental import pallas as pl
from jax.experimental.pallas import tpu as pltpu

EPS = 1e-5


def _bn_scale_shift(h_half, gamma, beta, n_rows):
    """Per-branch training-mode BatchNorm1d folded into one (scale, shift) pair.

    Centered two-pass variance (biased, matching PyTorch train-mode forward).
    Returns per-feature scale/shift so the normalization can be applied to the
    fused (2B, N) tensor with a row-mask select (no sublane concat needed).
    """
    inv_n = 1.0 / n_rows
    mean = jnp.sum(h_half, axis=0, keepdims=True) * inv_n
    centered = h_half - mean
    var = jnp.sum(centered * centered, axis=0, keepdims=True) * inv_n
    scale = jax.lax.rsqrt(var + EPS) * gamma
    shift = beta - mean * scale
    return scale, shift


def siamese_kernel(x1_ref, x2_ref,
                   w1_ref, gb1_ref,
                   w2_ref, gb2_ref,
                   w3d_ref, b3d_ref,
                   emb_ref, out_ref):
    B = emb_ref.shape[0]

    # Branch fusion: one (2B, K) LHS so w1/w2 are staged on the MXU once.
    x = jnp.concatenate([x1_ref[...], x2_ref[...]], axis=0).astype(jnp.bfloat16)

    # Row mask selecting branch 1 rows ([:B]) vs branch 2 rows ([B:]).
    is_b1 = jax.lax.broadcasted_iota(jnp.int32, (2 * B, 1), 0) < B

    # --- fc1: Linear(nch_info, 256) (bias dropped: cancelled by BN) ---
    h = jnp.dot(x, w1_ref[...], preferred_element_type=jnp.float32)     # (2B,256)
    g1, be1 = gb1_ref[0:1, :], gb1_ref[1:2, :]
    s1a, t1a = _bn_scale_shift(h[:B], g1, be1, B)
    s1b, t1b = _bn_scale_shift(h[B:], g1, be1, B)
    h = jnp.maximum(h * jnp.where(is_b1, s1a, s1b)
                    + jnp.where(is_b1, t1a, t1b), 0.0)                  # BN + ReLU

    # --- fc2: Linear(256, 64) (bias dropped), per-branch BN + Sigmoid ---
    e = jnp.dot(h.astype(jnp.bfloat16), w2_ref[...],
                preferred_element_type=jnp.float32)                     # (2B,64)
    g2, be2 = gb2_ref[0:1, :], gb2_ref[1:2, :]
    s2a, t2a = _bn_scale_shift(e[:B], g2, be2, B)
    s2b, t2b = _bn_scale_shift(e[B:], g2, be2, B)
    emb = jax.nn.sigmoid(e * jnp.where(is_b1, s2a, s2b)
                         + jnp.where(is_b1, t2a, t2b))                  # (2B,64)

    e1 = emb[:B]
    e2 = emb[B:]
    # Lane-dense packed embedding output: 64 + 64 = one full 128-lane group.
    emb_ref[...] = jnp.concatenate([e1, e2], axis=1)                    # (B,128)

    # --- distances -> fc3: Linear(64, 2) + Softmax(dim=1) ---
    # softmax([l0, l1]) == [sigmoid(l0 - l1), sigmoid(l1 - l0)].  The logit
    # difference is a VPU multiply + lane reduction (no N=1 MXU matvec).
    d = (e2 - e1) ** 2                                                  # (B,64)
    delta = jnp.sum(d * w3d_ref[...], axis=1, keepdims=True) + b3d_ref[0]
    out_ref[...] = jnp.concatenate(
        [jax.nn.sigmoid(-delta), jax.nn.sigmoid(delta)], axis=1)        # (B,2)


def prepare_params(params):
    """One-time parameter preprocessing; call once, reuse across forward calls."""
    w3, b3 = params["w3"], params["b3"]
    return dict(
        w1=params["w1"].astype(jnp.bfloat16),                       # (nch, 256)
        gb1=jnp.concatenate([params["g1"], params["be1"]], axis=0),  # (2, 256)
        w2=params["w2"].astype(jnp.bfloat16),                        # (256, 64)
        gb2=jnp.concatenate([params["g2"], params["be2"]], axis=0),  # (2, 64)
        w3d=(w3[:, 1] - w3[:, 0]).reshape(1, -1),                    # (1, 64)
        b3d=(b3[:, 1] - b3[:, 0]).reshape(-1),                       # (1,)  SMEM
        # fc1/fc2 biases intentionally dropped (cancelled by train-mode BN).
    )


@jax.jit
def attacker_siamese1_forward(x1, x2, prepared):
    B = x1.shape[0]
    assert B % 8 == 0, "pad batch to a multiple of 8 for sublane-aligned slices"

    args = (x1, x2,
            prepared["w1"], prepared["gb1"],
            prepared["w2"], prepared["gb2"],
            prepared["w3d"], prepared["b3d"])

    out_shape = (jax.ShapeDtypeStruct((B, 128), jnp.float32),   # [emb1 | emb2]
                 jax.ShapeDtypeStruct((B, 2), jnp.float32))     # softmax output

    vmem = pltpu.MemorySpace.VMEM
    smem = pltpu.MemorySpace.SMEM
    in_specs = [pl.BlockSpec(memory_space=vmem) for _ in range(7)] + \
               [pl.BlockSpec(memory_space=smem)]                 # b3d scalar
    out_specs = (pl.BlockSpec(memory_space=vmem),
                 pl.BlockSpec(memory_space=vmem))

    emb_packed, out = pl.pallas_call(
        siamese_kernel,
        out_shape=out_shape,
        in_specs=in_specs,
        out_specs=out_specs,
    )(*args)

    emb1 = emb_packed[:, :64]
    emb2 = emb_packed[:, 64:]
    return [emb1, emb2], out


def _reference_forward(x1, x2, params):
    """Pure-JAX f32 reference matching the PyTorch module in train() mode."""
    def bn(h, g, b):
        mean = jnp.mean(h, axis=0, keepdims=True)
        var = jnp.mean((h - mean) ** 2, axis=0, keepdims=True)  # biased
        return (h - mean) * jax.lax.rsqrt(var + EPS) * g + b

    def branch(x):
        h = jnp.maximum(bn(x @ params["w1"] + params["b1"],
                           params["g1"], params["be1"]), 0.0)
        return jax.nn.sigmoid(bn(h @ params["w2"] + params["b2"],
                                 params["g2"], params["be2"]))

    e1, e2 = branch(x1), branch(x2)
    logits = (e2 - e1) ** 2 @ params["w3"] + params["b3"]
    return [e1, e2], jax.nn.softmax(logits, axis=1)


if __name__ == "__main__":
    key = jax.random.PRNGKey(0)
    B, nch_info = 8, 32
    ks = jax.random.split(key, 8)

    x1 = jax.random.normal(ks[0], (B, nch_info), dtype=jnp.float32)
    x2 = jax.random.normal(ks[1], (B, nch_info), dtype=jnp.float32)

    params = dict(
        # fc1: Linear(nch_info, 256) + BatchNorm1d(256)
        w1=jax.random.normal(ks[2], (nch_info, 256), dtype=jnp.float32) * 0.1,
        b1=jax.random.normal(ks[3], (1, 256), dtype=jnp.float32) * 0.01,
        g1=jnp.ones((1, 256), dtype=jnp.float32),
        be1=jnp.zeros((1, 256), dtype=jnp.float32),
        # fc2: Linear(256, 64) + BatchNorm1d(64)
        w2=jax.random.normal(ks[4], (256, 64), dtype=jnp.float32) * 0.1,
        b2=jax.random.normal(ks[5], (1, 64), dtype=jnp.float32) * 0.01,
        g2=jnp.ones((1, 64), dtype=jnp.float32),
        be2=jnp.zeros((1, 64), dtype=jnp.float32),
        # fc3: Linear(64, 2)
        w3=jax.random.normal(ks[6], (64, 2), dtype=jnp.float32) * 0.1,
        b3=jax.random.normal(ks[7], (1, 2), dtype=jnp.float32) * 0.01,
    )

    prepared = prepare_params(params)            # one-time, outside the hot path
    (emb1, emb2), out = attacker_siamese1_forward(x1, x2, prepared)
    jax.block_until_ready((emb1, emb2, out))

    assert emb1.shape == (B, 64) and emb2.shape == (B, 64) and out.shape == (B, 2)
    assert bool(jnp.all(jnp.isfinite(out)))
    # probabilities of the 2-class softmax must sum to 1
    assert bool(jnp.allclose(jnp.sum(out, axis=-1), 1.0, atol=1e-5))

    # Numerics vs. the f32 reference (loose tolerance: bf16 MXU matmuls).
    (r1, r2), rout = _reference_forward(x1, x2, params)
    assert bool(jnp.allclose(emb1, r1, atol=5e-2))
    assert bool(jnp.allclose(emb2, r2, atol=5e-2))
    assert bool(jnp.allclose(out, rout, atol=5e-2))

    print("KERNEL_OK")
</pallas_src>

<mosaic_0001>
module attributes {stable_mosaic.version = 11 : i64} {
  func.func @siamese_kernel(%arg0: memref<8x32xf32, #tpu.memory_space<vmem>>, %arg1: memref<8x32xf32, #tpu.memory_space<vmem>>, %arg2: memref<32x256xbf16, #tpu.memory_space<vmem>>, %arg3: memref<2x256xf32, #tpu.memory_space<vmem>>, %arg4: memref<256x64xbf16, #tpu.memory_space<vmem>>, %arg5: memref<2x64xf32, #tpu.memory_space<vmem>>, %arg6: memref<1x64xf32, #tpu.memory_space<vmem>>, %arg7: memref<1xf32, #tpu.memory_space<smem>>, %arg8: memref<8x128xf32, #tpu.memory_space<vmem>>, %arg9: memref<8x2xf32, #tpu.memory_space<vmem>>) attributes {dimension_semantics = [], scalar_prefetch = 0 : i64, scratch_operands = 0 : i64, tpu.core_type = #tpu.core_type<tc>} {
    %c0 = arith.constant 0 : index
    %c0_0 = arith.constant 0 : index
    %0 = vector.load %arg0[%c0, %c0_0] : memref<8x32xf32, #tpu.memory_space<vmem>>, vector<8x32xf32>
    %c0_1 = arith.constant 0 : index
    %c0_2 = arith.constant 0 : index
    %1 = vector.load %arg1[%c0_1, %c0_2] : memref<8x32xf32, #tpu.memory_space<vmem>>, vector<8x32xf32>
    %2 = tpu.concatenate %0, %1 in 0 : vector<8x32xf32>, vector<8x32xf32> -> vector<16x32xf32>
    %3 = arith.truncf %2 : vector<16x32xf32> to vector<16x32xbf16>
    %4 = tpu.iota {dimensions = array<i32: 0>} : vector<16x1xi32>
    %c8_i32 = arith.constant 8 : i32
    %5 = vector.broadcast %c8_i32 : i32 to vector<16x1xi32>
    %6 = arith.cmpi slt, %4, %5 : vector<16x1xi32>
    %c0_3 = arith.constant 0 : index
    %c0_4 = arith.constant 0 : index
    %7 = vector.load %arg2[%c0_3, %c0_4] : memref<32x256xbf16, #tpu.memory_space<vmem>>, vector<32x256xbf16>
    %cst = arith.constant dense<0.000000e+00> : vector<16x256xf32>
    %8 = tpu.matmul %3, %7, %cst {dimension_numbers = #tpu.dot_dimension_numbers<[1], [0], [0], [1], [0, 0, 1, 1], [], []>} : vector<16x32xbf16>, vector<32x256xbf16>, vector<16x256xf32> -> vector<16x256xf32>
    %c0_5 = arith.constant 0 : index
    %c0_6 = arith.constant 0 : index
    %9 = vector.load %arg3[%c0_5, %c0_6] : memref<2x256xf32, #tpu.memory_space<vmem>>, vector<1x256xf32>
    %c1 = arith.constant 1 : index
    %c0_7 = arith.constant 0 : index
    %10 = vector.load %arg3[%c1, %c0_7] : memref<2x256xf32, #tpu.memory_space<vmem>>, vector<1x256xf32>
    %11 = vector.extract_strided_slice %8 {offsets = [0, 0], sizes = [8, 256], strides = [1, 1]} : vector<16x256xf32> to vector<8x256xf32>
    %cst_8 = arith.constant dense<0.000000e+00> : vector<256xf32>
    %12 = vector.multi_reduction <add>, %11, %cst_8 [0] : vector<8x256xf32> to vector<256xf32>
    %13 = vector.shape_cast %12 : vector<256xf32> to vector<1x256xf32>
    %cst_9 = arith.constant 1.250000e-01 : f32
    %14 = vector.broadcast %cst_9 : f32 to vector<1x256xf32>
    %15 = arith.mulf %13, %14 : vector<1x256xf32>
    %16 = vector.broadcast %15 : vector<1x256xf32> to vector<8x256xf32>
    %17 = arith.subf %11, %16 : vector<8x256xf32>
    %18 = arith.mulf %17, %17 : vector<8x256xf32>
    %cst_10 = arith.constant dense<0.000000e+00> : vector<256xf32>
    %19 = vector.multi_reduction <add>, %18, %cst_10 [0] : vector<8x256xf32> to vector<256xf32>
    %20 = vector.shape_cast %19 : vector<256xf32> to vector<1x256xf32>
    %cst_11 = arith.constant 1.250000e-01 : f32
    %21 = vector.broadcast %cst_11 : f32 to vector<1x256xf32>
    %22 = arith.mulf %20, %21 : vector<1x256xf32>
    %cst_12 = arith.constant 9.99999974E-6 : f32
    %23 = vector.broadcast %cst_12 : f32 to vector<1x256xf32>
    %24 = arith.addf %22, %23 : vector<1x256xf32>
    %25 = math.rsqrt %24 : vector<1x256xf32>
    %26 = arith.mulf %25, %9 : vector<1x256xf32>
    %27 = arith.mulf %15, %26 : vector<1x256xf32>
    %28 = arith.subf %10, %27 : vector<1x256xf32>
    %29 = vector.extract_strided_slice %8 {offsets = [8, 0], sizes = [8, 256], strides = [1, 1]} : vector<16x256xf32> to vector<8x256xf32>
    %cst_13 = arith.constant dense<0.000000e+00> : vector<256xf32>
    %30 = vector.multi_reduction <add>, %29, %cst_13 [0] : vector<8x256xf32> to vector<256xf32>
    %31 = vector.shape_cast %30 : vector<256xf32> to vector<1x256xf32>
    %cst_14 = arith.constant 1.250000e-01 : f32
    %32 = vector.broadcast %cst_14 : f32 to vector<1x256xf32>
    %33 = arith.mulf %31, %32 : vector<1x256xf32>
    %34 = vector.broadcast %33 : vector<1x256xf32> to vector<8x256xf32>
    %35 = arith.subf %29, %34 : vector<8x256xf32>
    %36 = arith.mulf %35, %35 : vector<8x256xf32>
    %cst_15 = arith.constant dense<0.000000e+00> : vector<256xf32>
    %37 = vector.multi_reduction <add>, %36, %cst_15 [0] : vector<8x256xf32> to vector<256xf32>
    %38 = vector.shape_cast %37 : vector<256xf32> to vector<1x256xf32>
    %cst_16 = arith.constant 1.250000e-01 : f32
    %39 = vector.broadcast %cst_16 : f32 to vector<1x256xf32>
    %40 = arith.mulf %38, %39 : vector<1x256xf32>
    %cst_17 = arith.constant 9.99999974E-6 : f32
    %41 = vector.broadcast %cst_17 : f32 to vector<1x256xf32>
    %42 = arith.addf %40, %41 : vector<1x256xf32>
    %43 = math.rsqrt %42 : vector<1x256xf32>
    %44 = arith.mulf %43, %9 : vector<1x256xf32>
    %45 = arith.mulf %33, %44 : vector<1x256xf32>
    %46 = arith.subf %10, %45 : vector<1x256xf32>
    %47 = vector.shape_cast %6 : vector<16x1xi1> to vector<16x1xi1>
    %48 = vector.broadcast %47 : vector<16x1xi1> to vector<16x256xi1>
    %49 = vector.shape_cast %26 : vector<1x256xf32> to vector<1x256xf32>
    %50 = vector.broadcast %49 : vector<1x256xf32> to vector<16x256xf32>
    %51 = vector.shape_cast %44 : vector<1x256xf32> to vector<1x256xf32>
    %52 = vector.broadcast %51 : vector<1x256xf32> to vector<16x256xf32>
    %53 = arith.select %48, %50, %52 : vector<16x256xi1>, vector<16x256xf32>
    %54 = arith.mulf %8, %53 : vector<16x256xf32>
    %55 = vector.shape_cast %6 : vector<16x1xi1> to vector<16x1xi1>
    %56 = vector.broadcast %55 : vector<16x1xi1> to vector<16x256xi1>
    %57 = vector.shape_cast %28 : vector<1x256xf32> to vector<1x256xf32>
    %58 = vector.broadcast %57 : vector<1x256xf32> to vector<16x256xf32>
    %59 = vector.shape_cast %46 : vector<1x256xf32> to vector<1x256xf32>
    %60 = vector.broadcast %59 : vector<1x256xf32> to vector<16x256xf32>
    %61 = arith.select %56, %58, %60 : vector<16x256xi1>, vector<16x256xf32>
    %62 = arith.addf %54, %61 : vector<16x256xf32>
    %cst_18 = arith.constant 0.000000e+00 : f32
    %63 = vector.broadcast %cst_18 : f32 to vector<16x256xf32>
    %64 = arith.maximumf %62, %63 : vector<16x256xf32>
    %65 = arith.truncf %64 : vector<16x256xf32> to vector<16x256xbf16>
    %c0_19 = arith.constant 0 : index
    %c0_20 = arith.constant 0 : index
    %66 = vector.load %arg4[%c0_19, %c0_20] : memref<256x64xbf16, #tpu.memory_space<vmem>>, vector<256x64xbf16>
    %cst_21 = arith.constant dense<0.000000e+00> : vector<16x64xf32>
    %67 = tpu.matmul %65, %66, %cst_21 {dimension_numbers = #tpu.dot_dimension_numbers<[1], [0], [0], [1], [0, 0, 1, 1], [], []>} : vector<16x256xbf16>, vector<256x64xbf16>, vector<16x64xf32> -> vector<16x64xf32>
    %c0_22 = arith.constant 0 : index
    %c0_23 = arith.constant 0 : index
    %68 = vector.load %arg5[%c0_22, %c0_23] : memref<2x64xf32, #tpu.memory_space<vmem>>, vector<1x64xf32>
    %c1_24 = arith.constant 1 : index
    %c0_25 = arith.constant 0 : index
    %69 = vector.load %arg5[%c1_24, %c0_25] : memref<2x64xf32, #tpu.memory_space<vmem>>, vector<1x64xf32>
    %70 = vector.extract_strided_slice %67 {offsets = [0, 0], sizes = [8, 64], strides = [1, 1]} : vector<16x64xf32> to vector<8x64xf32>
    %cst_26 = arith.constant dense<0.000000e+00> : vector<64xf32>
    %71 = vector.multi_reduction <add>, %70, %cst_26 [0] : vector<8x64xf32> to vector<64xf32>
    %72 = vector.shape_cast %71 : vector<64xf32> to vector<1x64xf32>
    %cst_27 = arith.constant 1.250000e-01 : f32
    %73 = vector.broadcast %cst_27 : f32 to vector<1x64xf32>
    %74 = arith.mulf %72, %73 : vector<1x64xf32>
    %75 = vector.broadcast %74 : vector<1x64xf32> to vector<8x64xf32>
    %76 = arith.subf %70, %75 : vector<8x64xf32>
    %77 = arith.mulf %76, %76 : vector<8x64xf32>
    %cst_28 = arith.constant dense<0.000000e+00> : vector<64xf32>
    %78 = vector.multi_reduction <add>, %77, %cst_28 [0] : vector<8x64xf32> to vector<64xf32>
    %79 = vector.shape_cast %78 : vector<64xf32> to vector<1x64xf32>
    %cst_29 = arith.constant 1.250000e-01 : f32
    %80 = vector.broadcast %cst_29 : f32 to vector<1x64xf32>
    %81 = arith.mulf %79, %80 : vector<1x64xf32>
    %cst_30 = arith.constant 9.99999974E-6 : f32
    %82 = vector.broadcast %cst_30 : f32 to vector<1x64xf32>
    %83 = arith.addf %81, %82 : vector<1x64xf32>
    %84 = math.rsqrt %83 : vector<1x64xf32>
    %85 = arith.mulf %84, %68 : vector<1x64xf32>
    %86 = arith.mulf %74, %85 : vector<1x64xf32>
    %87 = arith.subf %69, %86 : vector<1x64xf32>
    %88 = vector.extract_strided_slice %67 {offsets = [8, 0], sizes = [8, 64], strides = [1, 1]} : vector<16x64xf32> to vector<8x64xf32>
    %cst_31 = arith.constant dense<0.000000e+00> : vector<64xf32>
    %89 = vector.multi_reduction <add>, %88, %cst_31 [0] : vector<8x64xf32> to vector<64xf32>
    %90 = vector.shape_cast %89 : vector<64xf32> to vector<1x64xf32>
    %cst_32 = arith.constant 1.250000e-01 : f32
    %91 = vector.broadcast %cst_32 : f32 to vector<1x64xf32>
    %92 = arith.mulf %90, %91 : vector<1x64xf32>
    %93 = vector.broadcast %92 : vector<1x64xf32> to vector<8x64xf32>
    %94 = arith.subf %88, %93 : vector<8x64xf32>
    %95 = arith.mulf %94, %94 : vector<8x64xf32>
    %cst_33 = arith.constant dense<0.000000e+00> : vector<64xf32>
    %96 = vector.multi_reduction <add>, %95, %cst_33 [0] : vector<8x64xf32> to vector<64xf32>
    %97 = vector.shape_cast %96 : vector<64xf32> to vector<1x64xf32>
    %cst_34 = arith.constant 1.250000e-01 : f32
    %98 = vector.broadcast %cst_34 : f32 to vector<1x64xf32>
    %99 = arith.mulf %97, %98 : vector<1x64xf32>
    %cst_35 = arith.constant 9.99999974E-6 : f32
    %100 = vector.broadcast %cst_35 : f32 to vector<1x64xf32>
    %101 = arith.addf %99, %100 : vector<1x64xf32>
    %102 = math.rsqrt %101 : vector<1x64xf32>
    %103 = arith.mulf %102, %68 : vector<1x64xf32>
    %104 = arith.mulf %92, %103 : vector<1x64xf32>
    %105 = arith.subf %69, %104 : vector<1x64xf32>
    %106 = vector.shape_cast %6 : vector<16x1xi1> to vector<16x1xi1>
    %107 = vector.broadcast %106 : vector<16x1xi1> to vector<16x64xi1>
    %108 = vector.shape_cast %85 : vector<1x64xf32> to vector<1x64xf32>
    %109 = vector.broadcast %108 : vector<1x64xf32> to vector<16x64xf32>
    %110 = vector.shape_cast %103 : vector<1x64xf32> to vector<1x64xf32>
    %111 = vector.broadcast %110 : vector<1x64xf32> to vector<16x64xf32>
    %112 = arith.select %107, %109, %111 : vector<16x64xi1>, vector<16x64xf32>
    %113 = arith.mulf %67, %112 : vector<16x64xf32>
    %114 = vector.shape_cast %6 : vector<16x1xi1> to vector<16x1xi1>
    %115 = vector.broadcast %114 : vector<16x1xi1> to vector<16x64xi1>
    %116 = vector.shape_cast %87 : vector<1x64xf32> to vector<1x64xf32>
    %117 = vector.broadcast %116 : vector<1x64xf32> to vector<16x64xf32>
    %118 = vector.shape_cast %105 : vector<1x64xf32> to vector<1x64xf32>
    %119 = vector.broadcast %118 : vector<1x64xf32> to vector<16x64xf32>
    %120 = arith.select %115, %117, %119 : vector<16x64xi1>, vector<16x64xf32>
    %121 = arith.addf %113, %120 : vector<16x64xf32>
    %122 = arith.negf %121 : vector<16x64xf32>
    %123 = math.exp %122 : vector<16x64xf32>
    %cst_36 = arith.constant 1.000000e+00 : f32
    %124 = vector.broadcast %cst_36 : f32 to vector<16x64xf32>
    %125 = arith.addf %124, %123 : vector<16x64xf32>
    %126 = arith.divf %124, %125 : vector<16x64xf32>
    %127 = vector.extract_strided_slice %126 {offsets = [0, 0], sizes = [8, 64], strides = [1, 1]} : vector<16x64xf32> to vector<8x64xf32>
    %128 = vector.extract_strided_slice %126 {offsets = [8, 0], sizes = [8, 64], strides = [1, 1]} : vector<16x64xf32> to vector<8x64xf32>
    %129 = tpu.concatenate %127, %128 in 1 : vector<8x64xf32>, vector<8x64xf32> -> vector<8x128xf32>
    %c0_37 = arith.constant 0 : index
    %c0_38 = arith.constant 0 : index
    %130 = vector.load %arg8[%c0_37, %c0_38] : memref<8x128xf32, #tpu.memory_space<vmem>>, vector<8x128xf32>
    tpu.vector_store %arg8[%c0_37, %c0_38], %129 {strides = array<i32>} : memref<8x128xf32, #tpu.memory_space<vmem>>, vector<8x128xf32>,
    %131 = arith.subf %128, %127 : vector<8x64xf32>
    %132 = arith.mulf %131, %131 : vector<8x64xf32>
    %c0_39 = arith.constant 0 : index
    %c0_40 = arith.constant 0 : index
    %133 = vector.load %arg6[%c0_39, %c0_40] : memref<1x64xf32, #tpu.memory_space<vmem>>, vector<1x64xf32>
    %134 = vector.broadcast %133 : vector<1x64xf32> to vector<8x64xf32>
    %135 = arith.mulf %132, %134 : vector<8x64xf32>
    %cst_41 = arith.constant dense<0.000000e+00> : vector<8xf32>
    %136 = vector.multi_reduction <add>, %135, %cst_41 [1] : vector<8x64xf32> to vector<8xf32>
    %137 = vector.shape_cast %136 : vector<8xf32> to vector<8x1xf32>
    %c0_42 = arith.constant 0 : index
    %138 = memref.load %arg7[%c0_42] : memref<1xf32, #tpu.memory_space<smem>>
    %139 = vector.broadcast %138 : f32 to vector<8x1xf32>
    %140 = arith.addf %137, %139 : vector<8x1xf32>
    %cst_43 = arith.constant 0.000000e+00 : f32
    %141 = vector.broadcast %cst_43 : f32 to vector<8x1xf32>
    %142 = arith.subf %141, %140 : vector<8x1xf32>
    %143 = arith.negf %142 : vector<8x1xf32>
    %144 = math.exp %143 : vector<8x1xf32>
    %cst_44 = arith.constant 1.000000e+00 : f32
    %145 = vector.broadcast %cst_44 : f32 to vector<8x1xf32>
    %146 = arith.addf %145, %144 : vector<8x1xf32>
    %147 = arith.divf %145, %146 : vector<8x1xf32>
    %148 = arith.negf %140 : vector<8x1xf32>
    %149 = math.exp %148 : vector<8x1xf32>
    %cst_45 = arith.constant 1.000000e+00 : f32
    %150 = vector.broadcast %cst_45 : f32 to vector<8x1xf32>
    %151 = arith.addf %150, %149 : vector<8x1xf32>
    %152 = arith.divf %150, %151 : vector<8x1xf32>
    %153 = tpu.concatenate %147, %152 in 1 : vector<8x1xf32>, vector<8x1xf32> -> vector<8x2xf32>
    %c0_46 = arith.constant 0 : index
    %c0_47 = arith.constant 0 : index
    %154 = vector.load %arg9[%c0_46, %c0_47] : memref<8x2xf32, #tpu.memory_space<vmem>>, vector<8x2xf32>
    tpu.vector_store %arg9[%c0_46, %c0_47], %153 {strides = array<i32>} : memref<8x2xf32, #tpu.memory_space<vmem>>, vector<8x2xf32>,
    return
  }
}

</mosaic_0001>

<llo_original>
// kernel: attacker_siamese1_forward.1
$region0: #{attacker_siamese1_forward.1}
  #allocation0 [shape = 'u32[]', space=smem, size = 0x4, offset = 0x4, fixed_abs, tag = 'smem constant byte address 0x4 - core index']
  #allocation1 [shape = 'u32[144,128]{1,0:T(1,128)}', space=vmem, size = 0x12000, scoped, tag = 'internal scratch']
  #allocation2 [shape = 'f32[1]{0:T(128)S(6)}', space=smem, size = 0x200, scoped, tag = 'scoped memory for attacker_siamese1_forward.1']
  %s0 = inlined_call_operand.vmem [shape: f32[8,32], index: 0, kind: input, shape index: {}]
  %s1 = inlined_call_operand.vmem [shape: f32[8,32], index: 1, kind: input, shape index: {}]
  %s2 = inlined_call_operand.vmem [shape: bf16[32,256], index: 2, kind: input, shape index: {}]
  %s3 = inlined_call_operand.vmem [shape: f32[2,256], index: 3, kind: input, shape index: {}]
  %s4 = inlined_call_operand.vmem [shape: bf16[256,64], index: 4, kind: input, shape index: {}]
  %s5 = inlined_call_operand.vmem [shape: f32[2,64], index: 5, kind: input, shape index: {}]
  %s6 = inlined_call_operand.vmem [shape: f32[1,64], index: 6, kind: input, shape index: {}]
  %s7 = inlined_call_operand.<no memory space> [shape: f32[1], index: 7, kind: input, shape index: {}]
  %s8 = inlined_call_operand.vmem [shape: f32[8,128], index: 8, kind: output, shape index: {0}]
  %s9 = inlined_call_operand.vmem [shape: f32[8,2], index: 9, kind: output, shape index: {1}]
  %10 = xla_tuple %s8, %s9
  %s11 = sld [smem:[#allocation0]]
  $region50: #{attacker_siamese1_forward.1} parent=0
    _
  %s13 = ssub.s32 1, %s11
  %s14 = scalar_select 0, %s13, %s11
  %15 = sst [smem:[#allocation2]] %s7
  // Predicated region
  $region2: #{attacker_siamese1_forward.1} parent=0 // pred_check
    _
  $region3: #{attacker_siamese1_forward.1} parent=0 // pred_check_branch
    %17 = sbr.rel (0) target = $region5
  $region4: #{attacker_siamese1_forward.1} parent=0 // pred_region
    _
  $region5: #{attacker_siamese1_forward.1} parent=0 // pred_fallthru
    _
  // Predicated region
  $region6: #{attacker_siamese1_forward.1} parent=0 // pred_check
    _
  $region7: #{attacker_siamese1_forward.1} parent=0 // pred_check_branch
    %19 = sbr.rel (0) target = $region9
  $region8: #{attacker_siamese1_forward.1} parent=0 // pred_region
    _
  $region9: #{attacker_siamese1_forward.1} parent=0 // pred_fallthru
    _
  // Predicated region
  $region10: #{attacker_siamese1_forward.1} parent=0 // pred_check
    _
  $region11: #{attacker_siamese1_forward.1} parent=0 // pred_check_branch
    %21 = sbr.rel (0) target = $region13
  $region12: #{attacker_siamese1_forward.1} parent=0 // pred_region
    _
  $region13: #{attacker_siamese1_forward.1} parent=0 // pred_fallthru
    _
  // Predicated region
  $region14: #{attacker_siamese1_forward.1} parent=0 // pred_check
    _
  $region15: #{attacker_siamese1_forward.1} parent=0 // pred_check_branch
    %23 = sbr.rel (0) target = $region17
  $region16: #{attacker_siamese1_forward.1} parent=0 // pred_region
    _
  $region17: #{attacker_siamese1_forward.1} parent=0 // pred_fallthru
    _
  // Predicated region
  $region18: #{attacker_siamese1_forward.1} parent=0 // pred_check
    _
  $region19: #{attacker_siamese1_forward.1} parent=0 // pred_check_branch
    %25 = sbr.rel (0) target = $region21
  $region20: #{attacker_siamese1_forward.1} parent=0 // pred_region
    _
  $region21: #{attacker_siamese1_forward.1} parent=0 // pred_fallthru
    _
  // Predicated region
  $region22: #{attacker_siamese1_forward.1} parent=0 // pred_check
    _
  $region23: #{attacker_siamese1_forward.1} parent=0 // pred_check_branch
    %27 = sbr.rel (0) target = $region25
  $region24: #{attacker_siamese1_forward.1} parent=0 // pred_region
    _
  $region25: #{attacker_siamese1_forward.1} parent=0 // pred_fallthru
    _
  // Predicated region
  $region26: #{attacker_siamese1_forward.1} parent=0 // pred_check
    _
  $region27: #{attacker_siamese1_forward.1} parent=0 // pred_check_branch
    %29 = sbr.rel (0) target = $region29
  $region28: #{attacker_siamese1_forward.1} parent=0 // pred_region
    _
  $region29: #{attacker_siamese1_forward.1} parent=0 // pred_fallthru
    _
  // Predicated region
  $region30: #{attacker_siamese1_forward.1} parent=0 // pred_check
    _
  $region31: #{attacker_siamese1_forward.1} parent=0 // pred_check_branch
    %31 = sbr.rel (0) target = $region33
  $region32: #{attacker_siamese1_forward.1} parent=0 // pred_region
    _
  $region33: #{attacker_siamese1_forward.1} parent=0 // pred_fallthru
    _
  %v33 = vld [vmem:[%s0] sm:$0xff]
  %v34 = vld [vmem:[%s1] sm:$0xff]
  %v35 = vpack.c.bf16 %v34, %v33
  %v36 = vlaneseq
  %v37 = vshrl.u32 %v36, 7
  %v38 = vadd.s32 %v37, 8
  %vm39 = vcmp.lt.s32.totalorder %v37, 8
  %vm40 = vcmp.lt.s32.totalorder %v38, 8
  %v41 = vld [vmem:[%s2] sm:$0xff]
  %v42 = vld [vmem:[%s2 + $0x8] sm:$0xff]
  %v43 = vld [vmem:[%s2 + $0x10] sm:$0xff]
  %v44 = vld [vmem:[%s2 + $0x18] sm:$0xff]
  %v49 = vunpack.c.l.b16 %v41
  %v50 = vunpack.c.h.b16 %v41
  %v51 = vunpack.c.l.b16 %v42
  %v52 = vunpack.c.h.b16 %v42
  %v53 = vunpack.c.l.b16 %v43
  %v54 = vunpack.c.h.b16 %v43
  %v55 = vunpack.c.l.b16 %v44
  %v56 = vunpack.c.h.b16 %v44
  %v57 = vpack.c.b16 %v51, %v49
  %v58 = vpack.c.b16 %v52, %v50
  %v59 = vpack.c.b16 %v55, %v53
  %v60 = vpack.c.b16 %v56, %v54
  %vm65 = vcmask 261120
  %v67 = vsel %vm65, %v35, 0
  %69 = vmatprep.subr.bf16.mxu0 %v58
  %70 = vmatpush1.bf16.msra.mxu0 %v57
  %71 = vmatprep.subr.bf16.mxu0 %v60
  %72 = vmatpush1.bf16.msra.mxu0 %v59
  %73 = vmatprep.subr.bf16.mxu0 0
  %74 = vmatpush1.bf16.msra.mxu0 0
  %75 = vmatprep.subr.bf16.mxu0 0
  %76 = vmatpush1.bf16.msra.mxu0 0
  %77 = vmatprep.subr.bf16.mxu0 0
  %78 = vmatpush1.bf16.msra.mxu0 0
  %79 = vmatprep.subr.bf16.mxu0 0
  %80 = vmatpush1.bf16.msra.mxu0 0
  %81 = vmatprep.subr.bf16.mxu0 0
  %82 = vmatpush1.bf16.msra.mxu0 0
  %83 = vmatprep.subr.bf16.mxu0 0
  %84 = vmatpush1.bf16.msra.mxu0 0
  %85 = vmatprep.subr.bf16.mxu0 0
  %86 = vmatpush1.bf16.msra.mxu0 0
  %87 = vmatprep.subr.bf16.mxu0 0
  %88 = vmatpush1.bf16.msra.mxu0 0
  %89 = vmatprep.subr.bf16.mxu0 0
  %90 = vmatpush1.bf16.msra.mxu0 0
  %91 = vmatprep.subr.bf16.mxu0 0
  %92 = vmatpush1.bf16.msra.mxu0 0
  %93 = vmatprep.subr.bf16.mxu0 0
  %94 = vmatpush1.bf16.msra.mxu0 0
  %95 = vmatprep.subr.bf16.mxu0 0
  %96 = vmatpush1.bf16.msra.mxu0 0
  %97 = vmatprep.subr.bf16.mxu0 0
  %98 = vmatpush1.bf16.msra.mxu0 0
  %99 = vmatprep.subr.bf16.mxu0 0
  %100 = vmatpush1.bf16.msra.mxu0 0
  %101 = vmatprep.mubr.bf16.mxu0 0
  %102 = vmatmul.mubr.bf16.gmra.mrb[0].mxu0 %v67
  %v103 = vpop.f32.mrb[0].mxu0
  %v104 = vadd.f32 0.0, %v103
  %v105 = vpop.f32.mrb[0].mxu0
  %v106 = vadd.f32 0.0, %v105
  %v107 = vpop.f32.mrb[0].mxu0
  %v108 = vadd.f32 0.0, %v107
  %v109 = vpop.f32.mrb[0].mxu0
  %v110 = vadd.f32 0.0, %v109
  %111 = vdwg.mxu0
  %v112 = vld [vmem:[%s3] ss:$2 sm:$0x3]
  %s113 = scalar_lea.vmem %s3, 1
  %v114 = vld [vmem:[%s113] ss:$2 sm:$0x3]
  %v115 = vrot.slane %v104, 4
  %v116 = vadd.f32 %v104, %v115
  %v117 = vrot.slane %v116, 2
  %v118 = vadd.f32 %v116, %v117
  %v119 = vrot.slane %v118, 1
  %v120 = vadd.f32 %v118, %v119
  %v121 = vrot.slane %v106, 4
  %v122 = vadd.f32 %v106, %v121
  %v123 = vrot.slane %v122, 2
  %v124 = vadd.f32 %v122, %v123
  %v125 = vrot.slane %v124, 1
  %v126 = vadd.f32 %v124, %v125
  %v127 = vmul.f32 %v120, 0.125
  %v128 = vmul.f32 %v126, 0.125
  %v129 = vsub.f32 %v104, %v127
  %v130 = vsub.f32 %v106, %v128
  %v131 = vmul.f32 %v129, %v129
  %v132 = vmul.f32 %v130, %v130
  %v133 = vrot.slane %v131, 4
  %v134 = vadd.f32 %v131, %v133
  %v135 = vrot.slane %v134, 2
  %v136 = vadd.f32 %v134, %v135
  %v137 = vrot.slane %v136, 1
  %v138 = vadd.f32 %v136, %v137
  %v139 = vrot.slane %v132, 4
  %v140 = vadd.f32 %v132, %v139
  %v141 = vrot.slane %v140, 2
  %v142 = vadd.f32 %v140, %v141
  %v143 = vrot.slane %v142, 1
  %v144 = vadd.f32 %v142, %v143
  %v145 = vmul.f32 %v138, 0.125
  %v146 = vmul.f32 %v144, 0.125
  %v147 = vadd.f32 %v145, 1e-05
  %v148 = vadd.f32 %v146, 1e-05
  %v149 = vrsqrt.pop %v147
  %v150 = vrsqrt.pop %v148
  %v152 = vlaneseq
  %v153 = vshrl.u32 %v152, 7
  %v154 = vsub.s32 0, %v153
  %v155 = vrot.slane %v112, %v154
  %v156 = vlaneseq
  %v157 = vshrl.u32 %v156, 7
  %v158 = vsub.s32 1, %v157
  %v159 = vrot.slane %v112, %v158
  %v162 = vmul.f32 %v149, %v155
  %v163 = vmul.f32 %v150, %v159
  %v164 = vmul.f32 %v127, %v162
  %v165 = vmul.f32 %v128, %v163
  %v168 = vcombine.low %v164, %v165
  %v170 = vunpack.c.l.s4 1966171168
  %v171 = vunpack.c.0.s8 %v170
  %v172 = vlaneseq
  %v173 = vshrl.u32 %v172, 7
  %v174 = vsub.s32 %v171, %v173
  %v175 = vrot.slane %v168, %v174
  %v177 = vunpack.c.l.s4 1966171168
  %v178 = vunpack.c.0.s8 %v177
  %v179 = vlaneseq
  %v180 = vshrl.u32 %v179, 7
  %v181 = vsub.s32 %v178, %v180
  %v182 = vrot.slane %v175, %v181
  %v184 = vsub.f32 %v114, %v182
  %v185 = vrot.slane %v108, 4
  %v186 = vadd.f32 %v108, %v185
  %v187 = vrot.slane %v186, 2
  %v188 = vadd.f32 %v186, %v187
  %v189 = vrot.slane %v188, 1
  %v190 = vadd.f32 %v188, %v189
  %v191 = vrot.slane %v110, 4
  %v192 = vadd.f32 %v110, %v191
  %v193 = vrot.slane %v192, 2
  %v194 = vadd.f32 %v192, %v193
  %v195 = vrot.slane %v194, 1
  %v196 = vadd.f32 %v194, %v195
  %v197 = vmul.f32 %v190, 0.125
  %v198 = vmul.f32 %v196, 0.125
  %v199 = vsub.f32 %v108, %v197
  %v200 = vsub.f32 %v110, %v198
  %v201 = vmul.f32 %v199, %v199
  %v202 = vmul.f32 %v200, %v200
  %v203 = vrot.slane %v201, 4
  %v204 = vadd.f32 %v201, %v203
  %v205 = vrot.slane %v204, 2
  %v206 = vadd.f32 %v204, %v205
  %v207 = vrot.slane %v206, 1
  %v208 = vadd.f32 %v206, %v207
  %v209 = vrot.slane %v202, 4
  %v210 = vadd.f32 %v202, %v209
  %v211 = vrot.slane %v210, 2
  %v212 = vadd.f32 %v210, %v211
  %v213 = vrot.slane %v212, 1
  %v214 = vadd.f32 %v212, %v213
  %v215 = vmul.f32 %v208, 0.125
  %v216 = vmul.f32 %v214, 0.125
  %v217 = vadd.f32 %v215, 1e-05
  %v218 = vadd.f32 %v216, 1e-05
  %v219 = vrsqrt.pop %v217
  %v220 = vrsqrt.pop %v218
  %v221 = vmul.f32 %v219, %v155
  %v222 = vmul.f32 %v220, %v159
  %v223 = vmul.f32 %v197, %v221
  %v224 = vmul.f32 %v198, %v222
  %v227 = vcombine.low %v223, %v224
  %v229 = vunpack.c.l.s4 1966171168
  %v230 = vunpack.c.0.s8 %v229
  %v231 = vlaneseq
  %v232 = vshrl.u32 %v231, 7
  %v233 = vsub.s32 %v230, %v232
  %v234 = vrot.slane %v227, %v233
  %v236 = vunpack.c.l.s4 1966171168
  %v237 = vunpack.c.0.s8 %v236
  %v238 = vlaneseq
  %v239 = vshrl.u32 %v238, 7
  %v240 = vsub.s32 %v237, %v239
  %v241 = vrot.slane %v234, %v240
  %v243 = vsub.f32 %v114, %v241
  %v244 = vsel %vm39, 1, 0
  %v245 = vsel %vm40, 1, 0
  %vm246 = vcmp.eq.s32.totalorder %v244, 1
  %vm247 = vcmp.eq.s32.totalorder %v245, 1
  %v248 = vlaneseq
  %v249 = vshrl.u32 %v248, 7
  %v250 = vsub.s32 0, %v249
  %v251 = vrot.slane %v162, %v250
  %v252 = vlaneseq
  %v253 = vshrl.u32 %v252, 7
  %v254 = vsub.s32 0, %v253
  %v255 = vrot.slane %v163, %v254
  %v256 = vlaneseq
  %v257 = vshrl.u32 %v256, 7
  %v258 = vsub.s32 0, %v257
  %v259 = vrot.slane %v221, %v258
  %v260 = vlaneseq
  %v261 = vshrl.u32 %v260, 7
  %v262 = vsub.s32 0, %v261
  %v263 = vrot.slane %v222, %v262
  %v264 = vsel %vm246, %v251, %v259
  %v265 = vsel %vm246, %v255, %v263
  %v266 = vsel %vm247, %v251, %v259
  %v267 = vsel %vm247, %v255, %v263
  %v268 = vmul.f32 %v104, %v264
  %v269 = vmul.f32 %v106, %v265
  %v270 = vmul.f32 %v108, %v266
  %v271 = vmul.f32 %v110, %v267
  %v273 = vlaneseq
  %v274 = vshrl.u32 %v273, 7
  %v275 = vsub.s32 0, %v274
  %v276 = vrot.slane %v184, %v275
  %v277 = vlaneseq
  %v278 = vshrl.u32 %v277, 7
  %v279 = vsub.s32 1, %v278
  %v280 = vrot.slane %v184, %v279
  %v284 = vlaneseq
  %v285 = vshrl.u32 %v284, 7
  %v286 = vsub.s32 0, %v285
  %v287 = vrot.slane %v243, %v286
  %v288 = vlaneseq
  %v289 = vshrl.u32 %v288, 7
  %v290 = vsub.s32 1, %v289
  %v291 = vrot.slane %v243, %v290
  %v294 = vsel %vm246, %v276, %v287
  %v295 = vsel %vm246, %v280, %v291
  %v296 = vsel %vm247, %v276, %v287
  %v297 = vsel %vm247, %v280, %v291
  %v298 = vadd.f32 %v268, %v294
  %v299 = vadd.f32 %v269, %v295
  %v300 = vadd.f32 %v270, %v296
  %v301 = vadd.f32 %v271, %v297
  %v302 = vmax.f32 %v298, 0.0
  %v303 = vmax.f32 %v299, 0.0
  %v304 = vmax.f32 %v300, 0.0
  %v305 = vmax.f32 %v301, 0.0
  %v306 = vpack.c.bf16 %v304, %v302
  %v307 = vpack.c.bf16 %v305, %v303
  %v308 = vld [vmem:[%s4] sm:$0xf]
  %v309 = vld [vmem:[%s4 + $0x4] sm:$0xf]
  %v310 = vld [vmem:[%s4 + $0x8] sm:$0xf]
  %v311 = vld [vmem:[%s4 + $0xc] sm:$0xf]
  %v312 = vld [vmem:[%s4 + $0x10] sm:$0xf]
  %v313 = vld [vmem:[%s4 + $0x14] sm:$0xf]
  %v314 = vld [vmem:[%s4 + $0x18] sm:$0xf]
  %v315 = vld [vmem:[%s4 + $0x1c] sm:$0xf]
  %v316 = vld [vmem:[%s4 + $0x20] sm:$0xf]
  %v317 = vld [vmem:[%s4 + $0x24] sm:$0xf]
  %v318 = vld [vmem:[%s4 + $0x28] sm:$0xf]
  %v319 = vld [vmem:[%s4 + $0x2c] sm:$0xf]
  %v320 = vld [vmem:[%s4 + $0x30] sm:$0xf]
  %v321 = vld [vmem:[%s4 + $0x34] sm:$0xf]
  %v322 = vld [vmem:[%s4 + $0x38] sm:$0xf]
  %v323 = vld [vmem:[%s4 + $0x3c] sm:$0xf]
  %v324 = vld [vmem:[%s4 + $0x40] sm:$0xf]
  %v325 = vld [vmem:[%s4 + $0x44] sm:$0xf]
  %v326 = vld [vmem:[%s4 + $0x48] sm:$0xf]
  %v327 = vld [vmem:[%s4 + $0x4c] sm:$0xf]
  %v328 = vld [vmem:[%s4 + $0x50] sm:$0xf]
  %v329 = vld [vmem:[%s4 + $0x54] sm:$0xf]
  %v330 = vld [vmem:[%s4 + $0x58] sm:$0xf]
  %v331 = vld [vmem:[%s4 + $0x5c] sm:$0xf]
  %v332 = vld [vmem:[%s4 + $0x60] sm:$0xf]
  %v333 = vld [vmem:[%s4 + $0x64] sm:$0xf]
  %v334 = vld [vmem:[%s4 + $0x68] sm:$0xf]
  %v335 = vld [vmem:[%s4 + $0x6c] sm:$0xf]
  %v336 = vld [vmem:[%s4 + $0x70] sm:$0xf]
  %v337 = vld [vmem:[%s4 + $0x74] sm:$0xf]
  %v338 = vld [vmem:[%s4 + $0x78] sm:$0xf]
  %v339 = vld [vmem:[%s4 + $0x7c] sm:$0xf]
  %v372 = vunpack.c.l.b16 %v308
  %v373 = vunpack.c.l.b16 %v309
  %v374 = vunpack.c.l.b16 %v310
  %v375 = vunpack.c.l.b16 %v311
  %v376 = vunpack.c.l.b16 %v312
  %v377 = vunpack.c.l.b16 %v313
  %v378 = vunpack.c.l.b16 %v314
  %v379 = vunpack.c.l.b16 %v315
  %v380 = vunpack.c.l.b16 %v316
  %v381 = vunpack.c.l.b16 %v317
  %v382 = vunpack.c.l.b16 %v318
  %v383 = vunpack.c.l.b16 %v319
  %v384 = vunpack.c.l.b16 %v320
  %v385 = vunpack.c.l.b16 %v321
  %v386 = vunpack.c.l.b16 %v322
  %v387 = vunpack.c.l.b16 %v323
  %v388 = vunpack.c.l.b16 %v324
  %v389 = vunpack.c.l.b16 %v325
  %v390 = vunpack.c.l.b16 %v326
  %v391 = vunpack.c.l.b16 %v327
  %v392 = vunpack.c.l.b16 %v328
  %v393 = vunpack.c.l.b16 %v329
  %v394 = vunpack.c.l.b16 %v330
  %v395 = vunpack.c.l.b16 %v331
  %v396 = vunpack.c.l.b16 %v332
  %v397 = vunpack.c.l.b16 %v333
  %v398 = vunpack.c.l.b16 %v334
  %v399 = vunpack.c.l.b16 %v335
  %v400 = vunpack.c.l.b16 %v336
  %v401 = vunpack.c.l.b16 %v337
  %v402 = vunpack.c.l.b16 %v338
  %v403 = vunpack.c.l.b16 %v339
  %v404 = vpack.c.b16 %v373, %v372
  %v405 = vpack.c.b16 %v375, %v374
  %v406 = vpack.c.b16 %v377, %v376
  %v407 = vpack.c.b16 %v379, %v378
  %v408 = vpack.c.b16 %v381, %v380
  %v409 = vpack.c.b16 %v383, %v382
  %v410 = vpack.c.b16 %v385, %v384
  %v411 = vpack.c.b16 %v387, %v386
  %v412 = vpack.c.b16 %v389, %v388
  %v413 = vpack.c.b16 %v391, %v390
  %v414 = vpack.c.b16 %v393, %v392
  %v415 = vpack.c.b16 %v395, %v394
  %v416 = vpack.c.b16 %v397, %v396
  %v417 = vpack.c.b16 %v399, %v398
  %v418 = vpack.c.b16 %v401, %v400
  %v419 = vpack.c.b16 %v403, %v402
  %436 = vmatprep.subr.bf16.mxu0 0
  %437 = vmatpush1.bf16.msra.mxu0 %v404
  %438 = vmatprep.subr.bf16.mxu0 0
  %439 = vmatpush1.bf16.msra.mxu0 %v405
  %440 = vmatprep.subr.bf16.mxu0 0
  %441 = vmatpush1.bf16.msra.mxu0 %v406
  %442 = vmatprep.subr.bf16.mxu0 0
  %443 = vmatpush1.bf16.msra.mxu0 %v407
  %444 = vmatprep.subr.bf16.mxu0 0
  %445 = vmatpush1.bf16.msra.mxu0 %v408
  %446 = vmatprep.subr.bf16.mxu0 0
  %447 = vmatpush1.bf16.msra.mxu0 %v409
  %448 = vmatprep.subr.bf16.mxu0 0
  %449 = vmatpush1.bf16.msra.mxu0 %v410
  %450 = vmatprep.subr.bf16.mxu0 0
  %451 = vmatpush1.bf16.msra.mxu0 %v411
  %452 = vmatprep.subr.bf16.mxu0 0
  %453 = vmatpush1.bf16.msra.mxu0 %v412
  %454 = vmatprep.subr.bf16.mxu0 0
  %455 = vmatpush1.bf16.msra.mxu0 %v413
  %456 = vmatprep.subr.bf16.mxu0 0
  %457 = vmatpush1.bf16.msra.mxu0 %v414
  %458 = vmatprep.subr.bf16.mxu0 0
  %459 = vmatpush1.bf16.msra.mxu0 %v415
  %460 = vmatprep.subr.bf16.mxu0 0
  %461 = vmatpush1.bf16.msra.mxu0 %v416
  %462 = vmatprep.subr.bf16.mxu0 0
  %463 = vmatpush1.bf16.msra.mxu0 %v417
  %464 = vmatprep.subr.bf16.mxu0 0
  %465 = vmatpush1.bf16.msra.mxu0 %v418
  %466 = vmatprep.subr.bf16.mxu0 0
  %467 = vmatpush1.bf16.msra.mxu0 %v419
  %468 = vmatprep.mubr.bf16.mxu0 %v307
  %469 = vmatmul.mubr.bf16.gmra.mrb[0].mxu0 %v306
  %v470 = vpop.f32.mrb[0].mxu0
  %v471 = vadd.f32 0.0, %v470
  %v472 = vpop.f32.mrb[0].mxu0
  %v473 = vpop.f32.mrb[0].mxu0
  %v474 = vadd.f32 0.0, %v473
  %v475 = vpop.f32.mrb[0].mxu0
  %476 = vdwg.mxu0
  %v477 = vld [vmem:[%s5] sm:$0x1]
  %v478 = vld [vmem:[%s5 + $0x1] sm:$0x1]
  %vm479 = vcmask 523264
  %v480 = vsel %vm479, %v471, 0.0
  %v481 = vrot.slane %v480, 4
  %v482 = vadd.f32 %v480, %v481
  %v483 = vrot.slane %v482, 2
  %v484 = vadd.f32 %v482, %v483
  %v485 = vrot.slane %v484, 1
  %v486 = vadd.f32 %v484, %v485
  %v487 = vmul.f32 %v486, 0.125
  %v488 = vsub.f32 %v471, %v487
  %v489 = vmul.f32 %v488, %v488
  %v490 = vsel %vm479, %v489, 0.0
  %v491 = vrot.slane %v490, 4
  %v492 = vadd.f32 %v490, %v491
  %v493 = vrot.slane %v492, 2
  %v494 = vadd.f32 %v492, %v493
  %v495 = vrot.slane %v494, 1
  %v496 = vadd.f32 %v494, %v495
  %v497 = vmul.f32 %v496, 0.125
  %v498 = vadd.f32 %v497, 1e-05
  %v499 = vrsqrt.pop %v498
  %v500 = vmul.f32 %v499, %v477
  %v501 = vmul.f32 %v487, %v500
  %v502 = vsub.f32 %v478, %v501
  %v503 = vsel %vm479, %v474, 0.0
  %v504 = vrot.slane %v503, 4
  %v505 = vadd.f32 %v503, %v504
  %v506 = vrot.slane %v505, 2
  %v507 = vadd.f32 %v505, %v506
  %v508 = vrot.slane %v507, 1
  %v509 = vadd.f32 %v507, %v508
  %v510 = vmul.f32 %v509, 0.125
  %v511 = vsub.f32 %v474, %v510
  %v512 = vmul.f32 %v511, %v511
  %v513 = vsel %vm479, %v512, 0.0
  %v514 = vrot.slane %v513, 4
  %v515 = vadd.f32 %v513, %v514
  %v516 = vrot.slane %v515, 2
  %v517 = vadd.f32 %v515, %v516
  %v518 = vrot.slane %v517, 1
  %v519 = vadd.f32 %v517, %v518
  %v520 = vmul.f32 %v519, 0.125
  %v521 = vadd.f32 %v520, 1e-05
  %v522 = vrsqrt.pop %v521
  %v523 = vmul.f32 %v522, %v477
  %v524 = vmul.f32 %v510, %v523
  %v525 = vsub.f32 %v478, %v524
  %v526 = vlaneseq
  %v527 = vshrl.u32 %v526, 7
  %v528 = vsub.s32 0, %v527
  %v529 = vrot.slane %v500, %v528
  %v530 = vlaneseq
  %v531 = vshrl.u32 %v530, 7
  %v532 = vsub.s32 0, %v531
  %v533 = vrot.slane %v523, %v532
  %v534 = vsel %vm246, %v529, %v533
  %v535 = vsel %vm247, %v529, %v533
  %v536 = vmul.f32 %v471, %v534
  %v537 = vmul.f32 %v474, %v535
  %v538 = vlaneseq
  %v539 = vshrl.u32 %v538, 7
  %v540 = vsub.s32 0, %v539
  %v541 = vrot.slane %v502, %v540
  %v542 = vlaneseq
  %v543 = vshrl.u32 %v542, 7
  %v544 = vsub.s32 0, %v543
  %v545 = vrot.slane %v525, %v544
  %v546 = vsel %vm246, %v541, %v545
  %v547 = vsel %vm247, %v541, %v545
  %v548 = vadd.f32 %v536, %v546
  %v549 = vadd.f32 %v537, %v547
  %v550 = vxor.u32 %v548, 2147483648
  %v551 = vxor.u32 %v549, 2147483648
  %v552 = vmul.f32 %v550, 1.442695
  %v553 = vpow.pop %v552
  %v554 = vmul.f32 %v551, 1.442695
  %v555 = vpow.pop %v554
  %v556 = vadd.f32 %v553, 1.0
  %v557 = vadd.f32 %v555, 1.0
  %v558 = vrcp.pop %v556
  %v559 = vmul.f32 1.0, %v558
  %v560 = vrcp.pop %v557
  %v561 = vmul.f32 1.0, %v560
  %563 = vrot.lane.b32.xlu0 %v561, 64
  %v564 = vpop.permute.xlu0 %563
  %v566 = vsel %vm479, %v559, %v564
  %567 = vst [vmem:[%s8] sm:$0xff] %v566
  %v568 = vsub.f32 %v561, %v559
  %v569 = vmul.f32 %v568, %v568
  %v570 = vld [vmem:[%s6] sm:$0x1]
  %v572 = vlaneseq
  %v573 = vshrl.u32 %v572, 7
  %v574 = vsub.s32 0, %v573
  %v575 = vrot.slane %v570, %v574
  %v577 = vmul.f32 %v569, %v575
  %v578 = vsel %vm479, %v577, 0.0
  %579 = vadd.xlane.f32.xlu0 %v578
  %v580 = vpop.xlane.xlu0 %579
  %s581 = sld [smem:[#allocation2]]
  %v582 = vstv %s581
  %v583 = vadd.f32 %v580, %v582
  %v584 = vsub.f32 0.0, %v583
  %v585 = vxor.u32 %v584, 2147483648
  %v586 = vmul.f32 %v585, 1.442695
  %v587 = vpow.pop %v586
  %v588 = vadd.f32 %v587, 1.0
  %v589 = vrcp.pop %v588
  %v590 = vmul.f32 1.0, %v589
  %v591 = vxor.u32 %v583, 2147483648
  %v592 = vmul.f32 %v591, 1.442695
  %v593 = vpow.pop %v592
  %v594 = vadd.f32 %v593, 1.0
  %v595 = vrcp.pop %v594
  %v596 = vmul.f32 1.0, %v595
  %vm597 = vcmask 7168
  %v598 = vsel %vm597, %v590, %v596
  %vm599 = vcmask 15360
  %600 = vst.msk [vmem:[%s9] sm:$0xff] %vm599, %v598
  // Predicated region
  $region34: #{attacker_siamese1_forward.1} parent=0 // pred_check
    _
  $region35: #{attacker_siamese1_forward.1} parent=0 // pred_check_branch
    %602 = sbr.rel (0) target = $region37
  $region36: #{attacker_siamese1_forward.1} parent=0 // pred_region
    _
  $region37: #{attacker_siamese1_forward.1} parent=0 // pred_fallthru
    _
  // Predicated region
  $region38: #{attacker_siamese1_forward.1} parent=0 // pred_check
    _
  $region39: #{attacker_siamese1_forward.1} parent=0 // pred_check_branch
    %604 = sbr.rel (0) target = $region41
  $region40: #{attacker_siamese1_forward.1} parent=0 // pred_region
    _
  $region41: #{attacker_siamese1_forward.1} parent=0 // pred_fallthru
    _
  // Predicated region
  $region42: #{attacker_siamese1_forward.1} parent=0 // pred_check
    _
  $region43: #{attacker_siamese1_forward.1} parent=0 // pred_check_branch
    %606 = sbr.rel (0) target = $region45
  $region44: #{attacker_siamese1_forward.1} parent=0 // pred_region
    _
  $region45: #{attacker_siamese1_forward.1} parent=0 // pred_fallthru
    _
  // Predicated region
  $region46: #{attacker_siamese1_forward.1} parent=0 // pred_check
    _
  $region47: #{attacker_siamese1_forward.1} parent=0 // pred_check_branch
    %608 = sbr.rel (0) target = $region49
  $region48: #{attacker_siamese1_forward.1} parent=0 // pred_region
    _
  $region49: #{attacker_siamese1_forward.1} parent=0 // pred_fallthru
    _

</llo_original>
